<compile_context>
chip_gen: v6e
topology: v6e:2x2x1
jax: 0.10.0
libtpu: 0.0.40
codegen_flags: <defaults>
</compile_context>

<pallas_src>
import jax
import jax.numpy as jnp
from jax.experimental import pallas as pl
from jax.experimental.pallas import tpu as pltpu

# ----------------------------- configuration -------------------------------
B = 2                 # batch
N24 = 3840            # input waveform length @ 24 kHz
N16 = N24 * 2 // 3    # resampled length @ 16 kHz  (= 2560)
FRAME = 320           # samples per "WavLM" frame
T = N16 // FRAME      # frames per example (= 8)
H = 32                # hidden size of synthetic WavLM
N_LAYERS = 3          # transformer-ish layers -> N_LAYERS + 1 hidden states
N_HS = N_LAYERS + 1
C = N_HS * H          # discriminator input channels (= 128, lane-dense)
HD = 32               # discriminator hidden size
VOCAB = 16            # text vocab for synthetic conditioning
T_TEXT = 6

ROWS = 2 * B * T      # real + reconstructed rows batched together (= 32)
HALF = B * T          # rows per path (= 16)


# ------------------------------ fused kernel --------------------------------
def _fused_kernel(frames_ref, trows_ref,
                  w_in_ref, b_in_ref, w_lay_ref, b_lay_ref,
                  wd1_ref, bd1_ref, wd2_ref, bd2_ref, wout_ref, bout_ref,
                  out_ref):
    """One-shot fused forward.

    frames_ref : [2*B*T, FRAME] bf16 (rows 0..HALF-1 = real, HALF.. = reconstructed)
    trows_ref  : [2*B*T, HD]    f32 text conditioning, pre-broadcast per row
    w_*        : bf16 matmul weights (pre-cast in the wrapper)
    b_*        : f32 biases
    out_ref    : [1, 128] f32   lanes 0/1/2 = floss, loss_gen_all, d_loss
    """

    def linear(x_bf16, w_ref_val, b, act):
        # bf16 operands on the MXU, f32 accumulation; bias/tanh stay f32 (VPU/EUP).
        y = jnp.dot(x_bf16, w_ref_val,
                    preferred_element_type=jnp.float32) + b
        return jnp.tanh(y) if act else y

    # ---- synthetic WavLM stack (real + rec batched along rows) -------------
    x = frames_ref[...]                                          # [32, 320] bf16
    h = linear(x, w_in_ref[...], b_in_ref[...], act=True)        # [32, 32]  f32
    hidden = [h]
    for l in range(N_LAYERS):                                    # static unroll
        h = linear(h.astype(jnp.bfloat16), w_lay_ref[l], b_lay_ref[l], act=True)
        hidden.append(h)

    # ---- feature loss: sum_l mean(|real_l - rec_l|) -------------------------
    floss = jnp.float32(0.0)
    for hs in hidden:
        d = jnp.abs(hs[:HALF] - hs[HALF:])
        floss = floss + jnp.sum(d) / jnp.float32(HALF * H)

    # ---- discriminator input: concat hidden states along lanes -> [32, 128]
    # Same channel ordering as stack(dim=1).transpose(-1,-2).flatten(1,2)
    # viewed time-major (channel index = layer*H + h).
    disc_in = jnp.concatenate(hidden, axis=-1)                   # [32, C=128] f32

    # ---- synthetic mwd ------------------------------------------------------
    h1 = linear(disc_in.astype(jnp.bfloat16), wd1_ref[...], bd1_ref[...],
                act=True) + trows_ref[...]
    h2 = linear(h1.astype(jnp.bfloat16), wd2_ref[...], bd2_ref[...], act=True)
    # score head: [HD] -> 1 as VPU multiply + lane reduce (no N=1 MXU matmul)
    score = jnp.sum(h2 * wout_ref[...], axis=-1, keepdims=True) + bout_ref[...]
    score_real = score[:HALF]                                    # [16, 1]
    score_rec = score[HALF:]                                     # [16, 1]

    # ---- generator losses ---------------------------------------------------
    # NOTE: reproduces the reference bug — loss_fm only uses the LAST hidden
    # pair (h2); earlier pairs are dead work and therefore not computed.
    loss_fm = jnp.sum(jnp.abs(h2[:HALF] - h2[HALF:])) / jnp.float32(HALF * HD)
    one = jnp.float32(1.0)
    loss_gen_f = jnp.sum((one - score_rec) ** 2) / jnp.float32(HALF)
    loss_gen_all = loss_gen_f + loss_fm                          # loss_rel = 0

    # ---- discriminator losses ----------------------------------------------
    r_loss = jnp.sum((one - score_real) ** 2) / jnp.float32(HALF)
    g_loss = jnp.sum(score_rec ** 2) / jnp.float32(HALF)
    d_loss = r_loss + g_loss                                     # loss_rel = 0

    # ---- lane-dense scalar output (single unmasked (1,128) vst) ------------
    lanes = jax.lax.broadcasted_iota(jnp.int32, (1, 128), 1)
    out_ref[...] = (jnp.where(lanes == 0, floss, 0.0)
                    + jnp.where(lanes == 1, loss_gen_all, 0.0)
                    + jnp.where(lanes == 2, d_loss, 0.0))


_VMEM_SPEC = pl.BlockSpec(memory_space=pltpu.MemorySpace.VMEM)


# --------------------------- wrapper / forward ------------------------------
def _resample_24k_to_16k(wav):
    """[B, N24] -> [B, N16].  2/3 rate linear decimation.
    # TODO(synk): torchaudio sinc-windowed polyphase resample not reproduced;
    # a simple 3->2 linear decimation is used instead."""
    b, n = wav.shape
    g = wav[:, : (n // 3) * 3].reshape(b, n // 3, 3)
    out = jnp.stack([g[:, :, 0], 0.5 * (g[:, :, 1] + g[:, :, 2])], axis=-1)
    return out.reshape(b, (n // 3) * 2)


def _frames(w16):
    return w16[:, : T * FRAME].reshape(w16.shape[0] * T, FRAME)


@jax.jit
def _fused_losses(params, wav, y_rec, text):
    """Returns (floss, loss_gen_all, d_loss) from one fused Pallas kernel."""
    wav16 = _resample_24k_to_16k(wav)
    rec16 = _resample_24k_to_16k(y_rec)
    # MXU operands cast to bf16 once, outside the kernel (halves weight/input DMA).
    x = jnp.concatenate([_frames(wav16), _frames(rec16)],
                        axis=0).astype(jnp.bfloat16)              # [2*B*T, FRAME]

    # Text conditioning computed once (identical for real & rec mwd passes),
    # pre-broadcast to one row per (path, batch, frame).
    t_emb = jnp.mean(params["emb"][text], axis=1)                 # [B, HD]
    t_rows = jnp.tile(jnp.repeat(t_emb, T, axis=0), (2, 1))       # [2*B*T, HD]

    bf16 = jnp.bfloat16
    out = pl.pallas_call(
        _fused_kernel,
        out_shape=jax.ShapeDtypeStruct((1, 128), jnp.float32),
        in_specs=[_VMEM_SPEC] * 12,
        out_specs=_VMEM_SPEC,
    )(
        x, t_rows,
        params["w_in"].astype(bf16), params["b_in"].reshape(1, H),
        params["w_lay"].astype(bf16), params["b_lay"].reshape(N_LAYERS, 1, H),
        params["wd1"].astype(bf16), params["bd1"].reshape(1, HD),
        params["wd2"].astype(bf16), params["bd2"].reshape(1, HD),
        params["wout"].reshape(1, HD),          # [HD,1] head -> f32 row vector
        params["bout"].reshape(1, 1),
    )
    return out[0, 0], out[0, 1], out[0, 2]


def generator(params, wav, y_rec, text, adv=True):
    floss, loss_gen_all, _ = _fused_losses(params, wav, y_rec, text)
    if adv:
        return loss_gen_all, floss
    # matches the reference: torch.zeros(1) in the non-adversarial branch
    return jnp.zeros((1,), jnp.float32), floss


def discriminator(params, wav, y_rec, text):
    _, _, d_loss = _fused_losses(params, wav, y_rec, text)
    return d_loss


def wavlm_loss_forward(params, wav, y_rec, text,
                       generator_turn=False, discriminator_turn=False):
    assert generator_turn or discriminator_turn
    if generator_turn:
        return generator(params, wav, y_rec, text)
    return discriminator(params, wav, y_rec, text)


# ------------------------------ param init ---------------------------------
def init_params(key):
    ks = jax.random.split(key, 10)
    return {
        "w_in": jax.random.normal(ks[0], (FRAME, H), jnp.float32) / jnp.sqrt(FRAME),
        "b_in": jnp.zeros((H,), jnp.float32),
        "w_lay": jax.random.normal(ks[1], (N_LAYERS, H, H), jnp.float32) / jnp.sqrt(H),
        "b_lay": jnp.zeros((N_LAYERS, H), jnp.float32),
        "wd1": jax.random.normal(ks[2], (C, HD), jnp.float32) / jnp.sqrt(C),
        "bd1": jnp.zeros((HD,), jnp.float32),
        "wd2": jax.random.normal(ks[3], (HD, HD), jnp.float32) / jnp.sqrt(HD),
        "bd2": jnp.zeros((HD,), jnp.float32),
        "wout": jax.random.normal(ks[4], (HD, 1), jnp.float32) / jnp.sqrt(HD),
        "bout": jnp.zeros((1,), jnp.float32),
        "emb": 0.1 * jax.random.normal(ks[5], (VOCAB, HD), jnp.float32),
    }


# ---------------------------------- main ------------------------------------
if __name__ == "__main__":
    key = jax.random.PRNGKey(0)
    k_p, k_w, k_y, k_t = jax.random.split(key, 4)
    params = init_params(k_p)

    wav = 0.1 * jax.random.normal(k_w, (B, N24), jnp.float32)
    y_rec = 0.1 * jax.random.normal(k_y, (B, N24), jnp.float32)
    text = jax.random.randint(k_t, (B, T_TEXT), 0, VOCAB, jnp.int32)

    loss_gen_all, floss = wavlm_loss_forward(
        params, wav, y_rec, text, generator_turn=True)
    d_loss = wavlm_loss_forward(
        params, wav, y_rec, text, discriminator_turn=True)

    jax.block_until_ready((loss_gen_all, floss, d_loss))
    print("KERNEL_OK")
</pallas_src>

<mosaic_0001>
module attributes {stable_mosaic.version = 11 : i64} {
  func.func @_fused_kernel(%arg0: memref<32x320xbf16, #tpu.memory_space<vmem>>, %arg1: memref<32x32xf32, #tpu.memory_space<vmem>>, %arg2: memref<320x32xbf16, #tpu.memory_space<vmem>>, %arg3: memref<1x32xf32, #tpu.memory_space<vmem>>, %arg4: memref<3x32x32xbf16, #tpu.memory_space<vmem>>, %arg5: memref<3x1x32xf32, #tpu.memory_space<vmem>>, %arg6: memref<128x32xbf16, #tpu.memory_space<vmem>>, %arg7: memref<1x32xf32, #tpu.memory_space<vmem>>, %arg8: memref<32x32xbf16, #tpu.memory_space<vmem>>, %arg9: memref<1x32xf32, #tpu.memory_space<vmem>>, %arg10: memref<1x32xf32, #tpu.memory_space<vmem>>, %arg11: memref<1x1xf32, #tpu.memory_space<vmem>>, %arg12: memref<1x128xf32, #tpu.memory_space<vmem>>) attributes {dimension_semantics = [], scalar_prefetch = 0 : i64, scratch_operands = 0 : i64, tpu.core_type = #tpu.core_type<tc>} {
    %c0 = arith.constant 0 : index
    %c0_0 = arith.constant 0 : index
    %0 = vector.load %arg0[%c0, %c0_0] : memref<32x320xbf16, #tpu.memory_space<vmem>>, vector<32x320xbf16>
    %c0_1 = arith.constant 0 : index
    %c0_2 = arith.constant 0 : index
    %1 = vector.load %arg2[%c0_1, %c0_2] : memref<320x32xbf16, #tpu.memory_space<vmem>>, vector<320x32xbf16>
    %c0_3 = arith.constant 0 : index
    %c0_4 = arith.constant 0 : index
    %2 = vector.load %arg3[%c0_3, %c0_4] : memref<1x32xf32, #tpu.memory_space<vmem>>, vector<1x32xf32>
    %cst = arith.constant dense<0.000000e+00> : vector<32x32xf32>
    %3 = tpu.matmul %0, %1, %cst {dimension_numbers = #tpu.dot_dimension_numbers<[1], [0], [0], [1], [0, 0, 1, 1], [], []>} : vector<32x320xbf16>, vector<320x32xbf16>, vector<32x32xf32> -> vector<32x32xf32>
    %4 = vector.broadcast %2 : vector<1x32xf32> to vector<32x32xf32>
    %5 = arith.addf %3, %4 : vector<32x32xf32>
    %6 = math.tanh %5 : vector<32x32xf32>
    %7 = arith.truncf %6 : vector<32x32xf32> to vector<32x32xbf16>
    %c0_5 = arith.constant 0 : index
    %c0_6 = arith.constant 0 : index
    %c0_7 = arith.constant 0 : index
    %8 = vector.load %arg4[%c0_5, %c0_6, %c0_7] : memref<3x32x32xbf16, #tpu.memory_space<vmem>>, vector<1x32x32xbf16>
    %9 = vector.shape_cast %8 : vector<1x32x32xbf16> to vector<32x32xbf16>
    %c0_8 = arith.constant 0 : index
    %c0_9 = arith.constant 0 : index
    %c0_10 = arith.constant 0 : index
    %10 = vector.load %arg5[%c0_8, %c0_9, %c0_10] : memref<3x1x32xf32, #tpu.memory_space<vmem>>, vector<1x1x32xf32>
    %11 = vector.shape_cast %10 : vector<1x1x32xf32> to vector<1x32xf32>
    %cst_11 = arith.constant dense<0.000000e+00> : vector<32x32xf32>
    %12 = tpu.matmul %7, %9, %cst_11 {dimension_numbers = #tpu.dot_dimension_numbers<[1], [0], [0], [1], [0, 0, 1, 1], [], []>} : vector<32x32xbf16>, vector<32x32xbf16>, vector<32x32xf32> -> vector<32x32xf32>
    %13 = vector.broadcast %11 : vector<1x32xf32> to vector<32x32xf32>
    %14 = arith.addf %12, %13 : vector<32x32xf32>
    %15 = math.tanh %14 : vector<32x32xf32>
    %16 = arith.truncf %15 : vector<32x32xf32> to vector<32x32xbf16>
    %c1 = arith.constant 1 : index
    %c0_12 = arith.constant 0 : index
    %c0_13 = arith.constant 0 : index
    %17 = vector.load %arg4[%c1, %c0_12, %c0_13] : memref<3x32x32xbf16, #tpu.memory_space<vmem>>, vector<1x32x32xbf16>
    %18 = vector.shape_cast %17 : vector<1x32x32xbf16> to vector<32x32xbf16>
    %c1_14 = arith.constant 1 : index
    %c0_15 = arith.constant 0 : index
    %c0_16 = arith.constant 0 : index
    %19 = vector.load %arg5[%c1_14, %c0_15, %c0_16] : memref<3x1x32xf32, #tpu.memory_space<vmem>>, vector<1x1x32xf32>
    %20 = vector.shape_cast %19 : vector<1x1x32xf32> to vector<1x32xf32>
    %cst_17 = arith.constant dense<0.000000e+00> : vector<32x32xf32>
    %21 = tpu.matmul %16, %18, %cst_17 {dimension_numbers = #tpu.dot_dimension_numbers<[1], [0], [0], [1], [0, 0, 1, 1], [], []>} : vector<32x32xbf16>, vector<32x32xbf16>, vector<32x32xf32> -> vector<32x32xf32>
    %22 = vector.broadcast %20 : vector<1x32xf32> to vector<32x32xf32>
    %23 = arith.addf %21, %22 : vector<32x32xf32>
    %24 = math.tanh %23 : vector<32x32xf32>
    %25 = arith.truncf %24 : vector<32x32xf32> to vector<32x32xbf16>
    %c2 = arith.constant 2 : index
    %c0_18 = arith.constant 0 : index
    %c0_19 = arith.constant 0 : index
    %26 = vector.load %arg4[%c2, %c0_18, %c0_19] : memref<3x32x32xbf16, #tpu.memory_space<vmem>>, vector<1x32x32xbf16>
    %27 = vector.shape_cast %26 : vector<1x32x32xbf16> to vector<32x32xbf16>
    %c2_20 = arith.constant 2 : index
    %c0_21 = arith.constant 0 : index
    %c0_22 = arith.constant 0 : index
    %28 = vector.load %arg5[%c2_20, %c0_21, %c0_22] : memref<3x1x32xf32, #tpu.memory_space<vmem>>, vector<1x1x32xf32>
    %29 = vector.shape_cast %28 : vector<1x1x32xf32> to vector<1x32xf32>
    %cst_23 = arith.constant dense<0.000000e+00> : vector<32x32xf32>
    %30 = tpu.matmul %25, %27, %cst_23 {dimension_numbers = #tpu.dot_dimension_numbers<[1], [0], [0], [1], [0, 0, 1, 1], [], []>} : vector<32x32xbf16>, vector<32x32xbf16>, vector<32x32xf32> -> vector<32x32xf32>
    %31 = vector.broadcast %29 : vector<1x32xf32> to vector<32x32xf32>
    %32 = arith.addf %30, %31 : vector<32x32xf32>
    %33 = math.tanh %32 : vector<32x32xf32>
    %34 = vector.extract_strided_slice %6 {offsets = [0, 0], sizes = [16, 32], strides = [1, 1]} : vector<32x32xf32> to vector<16x32xf32>
    %35 = vector.extract_strided_slice %6 {offsets = [16, 0], sizes = [16, 32], strides = [1, 1]} : vector<32x32xf32> to vector<16x32xf32>
    %36 = arith.subf %34, %35 : vector<16x32xf32>
    %37 = math.absf %36 : vector<16x32xf32>
    %38 = vector.shape_cast %37 : vector<16x32xf32> to vector<1x16x32xf32>
    %cst_24 = arith.constant dense<0.000000e+00> : vector<1xf32>
    %39 = vector.multi_reduction <add>, %38, %cst_24 [1, 2] : vector<1x16x32xf32> to vector<1xf32>
    %40 = vector.shape_cast %39 : vector<1xf32> to vector<1x1x1xf32>
    %41 = vector.extract %40[0, 0, 0] : f32 from vector<1x1x1xf32>
    %cst_25 = arith.constant 5.120000e+02 : f32
    %42 = arith.divf %41, %cst_25 : f32
    %cst_26 = arith.constant 0.000000e+00 : f32
    %43 = arith.addf %cst_26, %42 : f32
    %44 = vector.extract_strided_slice %15 {offsets = [0, 0], sizes = [16, 32], strides = [1, 1]} : vector<32x32xf32> to vector<16x32xf32>
    %45 = vector.extract_strided_slice %15 {offsets = [16, 0], sizes = [16, 32], strides = [1, 1]} : vector<32x32xf32> to vector<16x32xf32>
    %46 = arith.subf %44, %45 : vector<16x32xf32>
    %47 = math.absf %46 : vector<16x32xf32>
    %48 = vector.shape_cast %47 : vector<16x32xf32> to vector<1x16x32xf32>
    %cst_27 = arith.constant dense<0.000000e+00> : vector<1xf32>
    %49 = vector.multi_reduction <add>, %48, %cst_27 [1, 2] : vector<1x16x32xf32> to vector<1xf32>
    %50 = vector.shape_cast %49 : vector<1xf32> to vector<1x1x1xf32>
    %51 = vector.extract %50[0, 0, 0] : f32 from vector<1x1x1xf32>
    %cst_28 = arith.constant 5.120000e+02 : f32
    %52 = arith.divf %51, %cst_28 : f32
    %53 = arith.addf %43, %52 : f32
    %54 = vector.extract_strided_slice %24 {offsets = [0, 0], sizes = [16, 32], strides = [1, 1]} : vector<32x32xf32> to vector<16x32xf32>
    %55 = vector.extract_strided_slice %24 {offsets = [16, 0], sizes = [16, 32], strides = [1, 1]} : vector<32x32xf32> to vector<16x32xf32>
    %56 = arith.subf %54, %55 : vector<16x32xf32>
    %57 = math.absf %56 : vector<16x32xf32>
    %58 = vector.shape_cast %57 : vector<16x32xf32> to vector<1x16x32xf32>
    %cst_29 = arith.constant dense<0.000000e+00> : vector<1xf32>
    %59 = vector.multi_reduction <add>, %58, %cst_29 [1, 2] : vector<1x16x32xf32> to vector<1xf32>
    %60 = vector.shape_cast %59 : vector<1xf32> to vector<1x1x1xf32>
    %61 = vector.extract %60[0, 0, 0] : f32 from vector<1x1x1xf32>
    %cst_30 = arith.constant 5.120000e+02 : f32
    %62 = arith.divf %61, %cst_30 : f32
    %63 = arith.addf %53, %62 : f32
    %64 = vector.extract_strided_slice %33 {offsets = [0, 0], sizes = [16, 32], strides = [1, 1]} : vector<32x32xf32> to vector<16x32xf32>
    %65 = vector.extract_strided_slice %33 {offsets = [16, 0], sizes = [16, 32], strides = [1, 1]} : vector<32x32xf32> to vector<16x32xf32>
    %66 = arith.subf %64, %65 : vector<16x32xf32>
    %67 = math.absf %66 : vector<16x32xf32>
    %68 = vector.shape_cast %67 : vector<16x32xf32> to vector<1x16x32xf32>
    %cst_31 = arith.constant dense<0.000000e+00> : vector<1xf32>
    %69 = vector.multi_reduction <add>, %68, %cst_31 [1, 2] : vector<1x16x32xf32> to vector<1xf32>
    %70 = vector.shape_cast %69 : vector<1xf32> to vector<1x1x1xf32>
    %71 = vector.extract %70[0, 0, 0] : f32 from vector<1x1x1xf32>
    %cst_32 = arith.constant 5.120000e+02 : f32
    %72 = arith.divf %71, %cst_32 : f32
    %73 = arith.addf %63, %72 : f32
    %74 = tpu.concatenate %6, %15, %24, %33 in 1 : vector<32x32xf32>, vector<32x32xf32>, vector<32x32xf32>, vector<32x32xf32> -> vector<32x128xf32>
    %75 = arith.truncf %74 : vector<32x128xf32> to vector<32x128xbf16>
    %c0_33 = arith.constant 0 : index
    %c0_34 = arith.constant 0 : index
    %76 = vector.load %arg6[%c0_33, %c0_34] : memref<128x32xbf16, #tpu.memory_space<vmem>>, vector<128x32xbf16>
    %c0_35 = arith.constant 0 : index
    %c0_36 = arith.constant 0 : index
    %77 = vector.load %arg7[%c0_35, %c0_36] : memref<1x32xf32, #tpu.memory_space<vmem>>, vector<1x32xf32>
    %cst_37 = arith.constant dense<0.000000e+00> : vector<32x32xf32>
    %78 = tpu.matmul %75, %76, %cst_37 {dimension_numbers = #tpu.dot_dimension_numbers<[1], [0], [0], [1], [0, 0, 1, 1], [], []>} : vector<32x128xbf16>, vector<128x32xbf16>, vector<32x32xf32> -> vector<32x32xf32>
    %79 = vector.broadcast %77 : vector<1x32xf32> to vector<32x32xf32>
    %80 = arith.addf %78, %79 : vector<32x32xf32>
    %81 = math.tanh %80 : vector<32x32xf32>
    %c0_38 = arith.constant 0 : index
    %c0_39 = arith.constant 0 : index
    %82 = vector.load %arg1[%c0_38, %c0_39] : memref<32x32xf32, #tpu.memory_space<vmem>>, vector<32x32xf32>
    %83 = arith.addf %81, %82 : vector<32x32xf32>
    %84 = arith.truncf %83 : vector<32x32xf32> to vector<32x32xbf16>
    %c0_40 = arith.constant 0 : index
    %c0_41 = arith.constant 0 : index
    %85 = vector.load %arg8[%c0_40, %c0_41] : memref<32x32xbf16, #tpu.memory_space<vmem>>, vector<32x32xbf16>
    %c0_42 = arith.constant 0 : index
    %c0_43 = arith.constant 0 : index
    %86 = vector.load %arg9[%c0_42, %c0_43] : memref<1x32xf32, #tpu.memory_space<vmem>>, vector<1x32xf32>
    %cst_44 = arith.constant dense<0.000000e+00> : vector<32x32xf32>
    %87 = tpu.matmul %84, %85, %cst_44 {dimension_numbers = #tpu.dot_dimension_numbers<[1], [0], [0], [1], [0, 0, 1, 1], [], []>} : vector<32x32xbf16>, vector<32x32xbf16>, vector<32x32xf32> -> vector<32x32xf32>
    %88 = vector.broadcast %86 : vector<1x32xf32> to vector<32x32xf32>
    %89 = arith.addf %87, %88 : vector<32x32xf32>
    %90 = math.tanh %89 : vector<32x32xf32>
    %c0_45 = arith.constant 0 : index
    %c0_46 = arith.constant 0 : index
    %91 = vector.load %arg10[%c0_45, %c0_46] : memref<1x32xf32, #tpu.memory_space<vmem>>, vector<1x32xf32>
    %92 = vector.broadcast %91 : vector<1x32xf32> to vector<32x32xf32>
    %93 = arith.mulf %90, %92 : vector<32x32xf32>
    %cst_47 = arith.constant dense<0.000000e+00> : vector<32xf32>
    %94 = vector.multi_reduction <add>, %93, %cst_47 [1] : vector<32x32xf32> to vector<32xf32>
    %95 = vector.shape_cast %94 : vector<32xf32> to vector<32x1xf32>
    %c0_48 = arith.constant 0 : index
    %c0_49 = arith.constant 0 : index
    %96 = vector.load %arg11[%c0_48, %c0_49] : memref<1x1xf32, #tpu.memory_space<vmem>>, vector<1x1xf32>
    %97 = vector.broadcast %96 : vector<1x1xf32> to vector<32x1xf32>
    %98 = arith.addf %95, %97 : vector<32x1xf32>
    %99 = vector.extract_strided_slice %98 {offsets = [0, 0], sizes = [16, 1], strides = [1, 1]} : vector<32x1xf32> to vector<16x1xf32>
    %100 = vector.extract_strided_slice %98 {offsets = [16, 0], sizes = [16, 1], strides = [1, 1]} : vector<32x1xf32> to vector<16x1xf32>
    %101 = vector.extract_strided_slice %90 {offsets = [0, 0], sizes = [16, 32], strides = [1, 1]} : vector<32x32xf32> to vector<16x32xf32>
    %102 = vector.extract_strided_slice %90 {offsets = [16, 0], sizes = [16, 32], strides = [1, 1]} : vector<32x32xf32> to vector<16x32xf32>
    %103 = arith.subf %101, %102 : vector<16x32xf32>
    %104 = math.absf %103 : vector<16x32xf32>
    %105 = vector.shape_cast %104 : vector<16x32xf32> to vector<1x16x32xf32>
    %cst_50 = arith.constant dense<0.000000e+00> : vector<1xf32>
    %106 = vector.multi_reduction <add>, %105, %cst_50 [1, 2] : vector<1x16x32xf32> to vector<1xf32>
    %107 = vector.shape_cast %106 : vector<1xf32> to vector<1x1x1xf32>
    %108 = vector.extract %107[0, 0, 0] : f32 from vector<1x1x1xf32>
    %cst_51 = arith.constant 5.120000e+02 : f32
    %109 = arith.divf %108, %cst_51 : f32
    %cst_52 = arith.constant 1.000000e+00 : f32
    %110 = vector.broadcast %cst_52 : f32 to vector<16x1xf32>
    %111 = arith.subf %110, %100 : vector<16x1xf32>
    %112 = arith.mulf %111, %111 : vector<16x1xf32>
    %113 = vector.shape_cast %112 : vector<16x1xf32> to vector<1x16x1xf32>
    %cst_53 = arith.constant dense<0.000000e+00> : vector<1xf32>
    %114 = vector.multi_reduction <add>, %113, %cst_53 [1, 2] : vector<1x16x1xf32> to vector<1xf32>
    %115 = vector.shape_cast %114 : vector<1xf32> to vector<1x1x1xf32>
    %116 = vector.extract %115[0, 0, 0] : f32 from vector<1x1x1xf32>
    %cst_54 = arith.constant 1.600000e+01 : f32
    %117 = arith.divf %116, %cst_54 : f32
    %118 = arith.addf %117, %109 : f32
    %cst_55 = arith.constant 1.000000e+00 : f32
    %119 = vector.broadcast %cst_55 : f32 to vector<16x1xf32>
    %120 = arith.subf %119, %99 : vector<16x1xf32>
    %121 = arith.mulf %120, %120 : vector<16x1xf32>
    %122 = vector.shape_cast %121 : vector<16x1xf32> to vector<1x16x1xf32>
    %cst_56 = arith.constant dense<0.000000e+00> : vector<1xf32>
    %123 = vector.multi_reduction <add>, %122, %cst_56 [1, 2] : vector<1x16x1xf32> to vector<1xf32>
    %124 = vector.shape_cast %123 : vector<1xf32> to vector<1x1x1xf32>
    %125 = vector.extract %124[0, 0, 0] : f32 from vector<1x1x1xf32>
    %cst_57 = arith.constant 1.600000e+01 : f32
    %126 = arith.divf %125, %cst_57 : f32
    %127 = arith.mulf %100, %100 : vector<16x1xf32>
    %128 = vector.shape_cast %127 : vector<16x1xf32> to vector<1x16x1xf32>
    %cst_58 = arith.constant dense<0.000000e+00> : vector<1xf32>
    %129 = vector.multi_reduction <add>, %128, %cst_58 [1, 2] : vector<1x16x1xf32> to vector<1xf32>
    %130 = vector.shape_cast %129 : vector<1xf32> to vector<1x1x1xf32>
    %131 = vector.extract %130[0, 0, 0] : f32 from vector<1x1x1xf32>
    %cst_59 = arith.constant 1.600000e+01 : f32
    %132 = arith.divf %131, %cst_59 : f32
    %133 = arith.addf %126, %132 : f32
    %134 = tpu.iota {dimensions = array<i32: 1>} : vector<1x128xi32>
    %c0_i32 = arith.constant 0 : i32
    %135 = vector.broadcast %c0_i32 : i32 to vector<1x128xi32>
    %136 = arith.cmpi eq, %134, %135 : vector<1x128xi32>
    %cst_60 = arith.constant 0.000000e+00 : f32
    %137 = vector.broadcast %73 : f32 to vector<1x128xf32>
    %138 = vector.broadcast %cst_60 : f32 to vector<1x128xf32>
    %139 = arith.select %136, %137, %138 : vector<1x128xi1>, vector<1x128xf32>
    %c1_i32 = arith.constant 1 : i32
    %140 = vector.broadcast %c1_i32 : i32 to vector<1x128xi32>
    %141 = arith.cmpi eq, %134, %140 : vector<1x128xi32>
    %cst_61 = arith.constant 0.000000e+00 : f32
    %142 = vector.broadcast %118 : f32 to vector<1x128xf32>
    %143 = vector.broadcast %cst_61 : f32 to vector<1x128xf32>
    %144 = arith.select %141, %142, %143 : vector<1x128xi1>, vector<1x128xf32>
    %145 = arith.addf %139, %144 : vector<1x128xf32>
    %c2_i32 = arith.constant 2 : i32
    %146 = vector.broadcast %c2_i32 : i32 to vector<1x128xi32>
    %147 = arith.cmpi eq, %134, %146 : vector<1x128xi32>
    %cst_62 = arith.constant 0.000000e+00 : f32
    %148 = vector.broadcast %133 : f32 to vector<1x128xf32>
    %149 = vector.broadcast %cst_62 : f32 to vector<1x128xf32>
    %150 = arith.select %147, %148, %149 : vector<1x128xi1>, vector<1x128xf32>
    %151 = arith.addf %145, %150 : vector<1x128xf32>
    %c0_63 = arith.constant 0 : index
    %c0_64 = arith.constant 0 : index
    %152 = vector.load %arg12[%c0_63, %c0_64] : memref<1x128xf32, #tpu.memory_space<vmem>>, vector<1x128xf32>
    tpu.vector_store %arg12[%c0_63, %c0_64], %151 {strides = array<i32>} : memref<1x128xf32, #tpu.memory_space<vmem>>, vector<1x128xf32>,
    return
  }
}

</mosaic_0001>

<llo_original>
// kernel: _fused_losses.1
$region0: #{_fused_losses.1}
  #allocation0 [shape = 'u32[]', space=smem, size = 0x4, offset = 0x4, fixed_abs, tag = 'smem constant byte address 0x4 - core index']
  #allocation1 [shape = 'u32[144,128]{1,0:T(1,128)}', space=vmem, size = 0x12000, scoped, tag = 'internal scratch']
  #allocation2 [shape = 'f32[1,1]{1,0:T(1,128)S(1)}', space=vmem, size = 0x200, scoped, tag = 'scoped memory for _fused_losses.1']
  %s0 = inlined_call_operand.vmem [shape: bf16[32,320], index: 0, kind: input, shape index: {}]
  %s1 = inlined_call_operand.vmem [shape: f32[32,32], index: 1, kind: input, shape index: {}]
  %s2 = inlined_call_operand.vmem [shape: bf16[320,32], index: 2, kind: input, shape index: {}]
  %s3 = inlined_call_operand.vmem [shape: f32[1,32], index: 3, kind: input, shape index: {}]
  %s4 = inlined_call_operand.vmem [shape: bf16[3,32,32], index: 4, kind: input, shape index: {}]
  %s5 = inlined_call_operand.vmem [shape: f32[3,1,32], index: 5, kind: input, shape index: {}]
  %s6 = inlined_call_operand.vmem [shape: bf16[128,32], index: 6, kind: input, shape index: {}]
  %s7 = inlined_call_operand.vmem [shape: f32[1,32], index: 7, kind: input, shape index: {}]
  %s8 = inlined_call_operand.vmem [shape: bf16[32,32], index: 8, kind: input, shape index: {}]
  %s9 = inlined_call_operand.vmem [shape: f32[1,32], index: 9, kind: input, shape index: {}]
  %s10 = inlined_call_operand.vmem [shape: f32[1,32], index: 10, kind: input, shape index: {}]
  %s11 = inlined_call_operand.<no memory space> [shape: f32[1,1], index: 11, kind: input, shape index: {}]
  %s12 = inlined_call_operand.vmem [shape: f32[1,128], index: 12, kind: output, shape index: {}]
  %s13 = sld [smem:[#allocation0]]
  $region58: #{_fused_losses.1} parent=0
    _
  %s15 = ssub.s32 1, %s13
  %s16 = scalar_select 0, %s15, %s13
  %v17 = vstv %s11
  %18 = vst [vmem:[#allocation2] sm:$0x1] %v17
  // Predicated region
  $region2: #{_fused_losses.1} parent=0 // pred_check
    _
  $region3: #{_fused_losses.1} parent=0 // pred_check_branch
    %20 = sbr.rel (0) target = $region5
  $region4: #{_fused_losses.1} parent=0 // pred_region
    _
  $region5: #{_fused_losses.1} parent=0 // pred_fallthru
    _
  // Predicated region
  $region6: #{_fused_losses.1} parent=0 // pred_check
    _
  $region7: #{_fused_losses.1} parent=0 // pred_check_branch
    %22 = sbr.rel (0) target = $region9
  $region8: #{_fused_losses.1} parent=0 // pred_region
    _
  $region9: #{_fused_losses.1} parent=0 // pred_fallthru
    _
  // Predicated region
  $region10: #{_fused_losses.1} parent=0 // pred_check
    _
  $region11: #{_fused_losses.1} parent=0 // pred_check_branch
    %24 = sbr.rel (0) target = $region13
  $region12: #{_fused_losses.1} parent=0 // pred_region
    _
  $region13: #{_fused_losses.1} parent=0 // pred_fallthru
    _
  // Predicated region
  $region14: #{_fused_losses.1} parent=0 // pred_check
    _
  $region15: #{_fused_losses.1} parent=0 // pred_check_branch
    %26 = sbr.rel (0) target = $region17
  $region16: #{_fused_losses.1} parent=0 // pred_region
    _
  $region17: #{_fused_losses.1} parent=0 // pred_fallthru
    _
  // Predicated region
  $region18: #{_fused_losses.1} parent=0 // pred_check
    _
  $region19: #{_fused_losses.1} parent=0 // pred_check_branch
    %28 = sbr.rel (0) target = $region21
  $region20: #{_fused_losses.1} parent=0 // pred_region
    _
  $region21: #{_fused_losses.1} parent=0 // pred_fallthru
    _
  // Predicated region
  $region22: #{_fused_losses.1} parent=0 // pred_check
    _
  $region23: #{_fused_losses.1} parent=0 // pred_check_branch
    %30 = sbr.rel (0) target = $region25
  $region24: #{_fused_losses.1} parent=0 // pred_region
    _
  $region25: #{_fused_losses.1} parent=0 // pred_fallthru
    _
  // Predicated region
  $region26: #{_fused_losses.1} parent=0 // pred_check
    _
  $region27: #{_fused_losses.1} parent=0 // pred_check_branch
    %32 = sbr.rel (0) target = $region29
  $region28: #{_fused_losses.1} parent=0 // pred_region
    _
  $region29: #{_fused_losses.1} parent=0 // pred_fallthru
    _
  // Predicated region
  $region30: #{_fused_losses.1} parent=0 // pred_check
    _
  $region31: #{_fused_losses.1} parent=0 // pred_check_branch
    %34 = sbr.rel (0) target = $region33
  $region32: #{_fused_losses.1} parent=0 // pred_region
    _
  $region33: #{_fused_losses.1} parent=0 // pred_fallthru
    _
  // Predicated region
  $region34: #{_fused_losses.1} parent=0 // pred_check
    _
  $region35: #{_fused_losses.1} parent=0 // pred_check_branch
    %36 = sbr.rel (0) target = $region37
  $region36: #{_fused_losses.1} parent=0 // pred_region
    _
  $region37: #{_fused_losses.1} parent=0 // pred_fallthru
    _
  // Predicated region
  $region38: #{_fused_losses.1} parent=0 // pred_check
    _
  $region39: #{_fused_losses.1} parent=0 // pred_check_branch
    %38 = sbr.rel (0) target = $region41
  $region40: #{_fused_losses.1} parent=0 // pred_region
    _
  $region41: #{_fused_losses.1} parent=0 // pred_fallthru
    _
  // Predicated region
  $region42: #{_fused_losses.1} parent=0 // pred_check
    _
  $region43: #{_fused_losses.1} parent=0 // pred_check_branch
    %40 = sbr.rel (0) target = $region45
  $region44: #{_fused_losses.1} parent=0 // pred_region
    _
  $region45: #{_fused_losses.1} parent=0 // pred_fallthru
    _
  // Predicated region
  $region46: #{_fused_losses.1} parent=0 // pred_check
    _
  $region47: #{_fused_losses.1} parent=0 // pred_check_branch
    %42 = sbr.rel (0) target = $region49
  $region48: #{_fused_losses.1} parent=0 // pred_region
    _
  $region49: #{_fused_losses.1} parent=0 // pred_fallthru
    _
  %v44 = vld [vmem:[%s0] sm:$0xff]
  %v45 = vld [vmem:[%s0 + $0x8] sm:$0xf]
  %v46 = vld [vmem:[%s0 + $0xc] sm:$0xff]
  %v47 = vld [vmem:[%s0 + $0x14] sm:$0xf]
  %v48 = vld [vmem:[%s0 + $0x18] sm:$0xff]
  %v49 = vld [vmem:[%s0 + $0x20] sm:$0xf]
  %v50 = vld [vmem:[%s0 + $0x24] sm:$0xff]
  %v51 = vld [vmem:[%s0 + $0x2c] sm:$0xf]
  %v52 = vld [vmem:[%s2] sm:$0xf]
  %v53 = vld [vmem:[%s2 + $0x4] sm:$0xf]
  %v54 = vld [vmem:[%s2 + $0x8] sm:$0xf]
  %v55 = vld [vmem:[%s2 + $0xc] sm:$0xf]
  %v56 = vld [vmem:[%s2 + $0x10] sm:$0xf]
  %v57 = vld [vmem:[%s2 + $0x14] sm:$0xf]
  %v58 = vld [vmem:[%s2 + $0x18] sm:$0xf]
  %v59 = vld [vmem:[%s2 + $0x1c] sm:$0xf]
  %v60 = vld [vmem:[%s2 + $0x20] sm:$0xf]
  %v61 = vld [vmem:[%s2 + $0x24] sm:$0xf]
  %v62 = vld [vmem:[%s2 + $0x28] sm:$0xf]
  %v63 = vld [vmem:[%s2 + $0x2c] sm:$0xf]
  %v64 = vld [vmem:[%s2 + $0x30] sm:$0xf]
  %v65 = vld [vmem:[%s2 + $0x34] sm:$0xf]
  %v66 = vld [vmem:[%s2 + $0x38] sm:$0xf]
  %v67 = vld [vmem:[%s2 + $0x3c] sm:$0xf]
  %v68 = vld [vmem:[%s2 + $0x40] sm:$0xf]
  %v69 = vld [vmem:[%s2 + $0x44] sm:$0xf]
  %v70 = vld [vmem:[%s2 + $0x48] sm:$0xf]
  %v71 = vld [vmem:[%s2 + $0x4c] sm:$0xf]
  %v72 = vld [vmem:[%s2 + $0x50] sm:$0xf]
  %v73 = vld [vmem:[%s2 + $0x54] sm:$0xf]
  %v74 = vld [vmem:[%s2 + $0x58] sm:$0xf]
  %v75 = vld [vmem:[%s2 + $0x5c] sm:$0xf]
  %v76 = vld [vmem:[%s2 + $0x60] sm:$0xf]
  %v77 = vld [vmem:[%s2 + $0x64] sm:$0xf]
  %v78 = vld [vmem:[%s2 + $0x68] sm:$0xf]
  %v79 = vld [vmem:[%s2 + $0x6c] sm:$0xf]
  %v80 = vld [vmem:[%s2 + $0x70] sm:$0xf]
  %v81 = vld [vmem:[%s2 + $0x74] sm:$0xf]
  %v82 = vld [vmem:[%s2 + $0x78] sm:$0xf]
  %v83 = vld [vmem:[%s2 + $0x7c] sm:$0xf]
  %v84 = vld [vmem:[%s2 + $0x80] sm:$0xf]
  %v85 = vld [vmem:[%s2 + $0x84] sm:$0xf]
  %v86 = vld [vmem:[%s2 + $0x88] sm:$0xf]
  %v87 = vld [vmem:[%s2 + $0x8c] sm:$0xf]
  %v88 = vld [vmem:[%s2 + $0x90] sm:$0xf]
  %v89 = vld [vmem:[%s2 + $0x94] sm:$0xf]
  %v90 = vld [vmem:[%s2 + $0x98] sm:$0xf]
  %v91 = vld [vmem:[%s2 + $0x9c] sm:$0xf]
  %v92 = vld [vmem:[%s3] sm:$0x1]
  %v94 = vlaneseq
  %v95 = vshrl.u32 %v94, 7
  %v96 = vsub.s32 0, %v95
  %v97 = vrot.slane %v92, %v96
  %v107 = vunpack.c.l.b16 %v44
  %v108 = vunpack.c.h.b16 %v44
  %v109 = vunpack.c.l.b16 %v45
  %v110 = vunpack.c.l.b16 %v46
  %v111 = vunpack.c.h.b16 %v46
  %v112 = vunpack.c.l.b16 %v47
  %v113 = vunpack.c.l.b16 %v48
  %v114 = vunpack.c.h.b16 %v48
  %v115 = vunpack.c.l.b16 %v49
  %v116 = vunpack.c.l.b16 %v50
  %v117 = vunpack.c.h.b16 %v50
  %v118 = vunpack.c.l.b16 %v51
  %v119 = vpack.c.b16 %v110, %v107
  %v120 = vpack.c.b16 %v111, %v108
  %v121 = vpack.c.b16 %v112, %v109
  %v122 = vpack.c.b16 %v116, %v113
  %v123 = vpack.c.b16 %v117, %v114
  %v124 = vpack.c.b16 %v118, %v115
  %v169 = vunpack.c.l.b16 %v52
  %v170 = vunpack.c.l.b16 %v53
  %v171 = vunpack.c.l.b16 %v54
  %v172 = vunpack.c.l.b16 %v55
  %v173 = vunpack.c.l.b16 %v56
  %v174 = vunpack.c.l.b16 %v57
  %v175 = vunpack.c.l.b16 %v58
  %v176 = vunpack.c.l.b16 %v59
  %v177 = vunpack.c.l.b16 %v60
  %v178 = vunpack.c.l.b16 %v61
  %v179 = vunpack.c.l.b16 %v62
  %v180 = vunpack.c.l.b16 %v63
  %v181 = vunpack.c.l.b16 %v64
  %v182 = vunpack.c.l.b16 %v65
  %v183 = vunpack.c.l.b16 %v66
  %v184 = vunpack.c.l.b16 %v67
  %v185 = vunpack.c.l.b16 %v68
  %v186 = vunpack.c.l.b16 %v69
  %v187 = vunpack.c.l.b16 %v70
  %v188 = vunpack.c.l.b16 %v71
  %v189 = vunpack.c.l.b16 %v72
  %v190 = vunpack.c.l.b16 %v73
  %v191 = vunpack.c.l.b16 %v74
  %v192 = vunpack.c.l.b16 %v75
  %v193 = vunpack.c.l.b16 %v76
  %v194 = vunpack.c.l.b16 %v77
  %v195 = vunpack.c.l.b16 %v78
  %v196 = vunpack.c.l.b16 %v79
  %v197 = vunpack.c.l.b16 %v80
  %v198 = vunpack.c.l.b16 %v81
  %v199 = vunpack.c.l.b16 %v82
  %v200 = vunpack.c.l.b16 %v83
  %v201 = vunpack.c.l.b16 %v84
  %v202 = vunpack.c.l.b16 %v85
  %v203 = vunpack.c.l.b16 %v86
  %v204 = vunpack.c.l.b16 %v87
  %v205 = vunpack.c.l.b16 %v88
  %v206 = vunpack.c.l.b16 %v89
  %v207 = vunpack.c.l.b16 %v90
  %v208 = vunpack.c.l.b16 %v91
  %v209 = vpack.c.b16 %v170, %v169
  %v210 = vpack.c.b16 %v172, %v171
  %v211 = vpack.c.b16 %v174, %v173
  %v212 = vpack.c.b16 %v176, %v175
  %v213 = vpack.c.b16 %v178, %v177
  %v214 = vpack.c.b16 %v180, %v179
  %v215 = vpack.c.b16 %v182, %v181
  %v216 = vpack.c.b16 %v184, %v183
  %v217 = vpack.c.b16 %v186, %v185
  %v218 = vpack.c.b16 %v188, %v187
  %v219 = vpack.c.b16 %v190, %v189
  %v220 = vpack.c.b16 %v192, %v191
  %v221 = vpack.c.b16 %v194, %v193
  %v222 = vpack.c.b16 %v196, %v195
  %v223 = vpack.c.b16 %v198, %v197
  %v224 = vpack.c.b16 %v200, %v199
  %v225 = vpack.c.b16 %v202, %v201
  %v226 = vpack.c.b16 %v204, %v203
  %v227 = vpack.c.b16 %v206, %v205
  %v228 = vpack.c.b16 %v208, %v207
  %vm249 = vcmask 523264
  %v251 = vsel %vm249, %v121, 0
  %v254 = vsel %vm249, %v124, 0
  %256 = vmatprep.subr.bf16.mxu0 0
  %257 = vmatpush1.bf16.msra.mxu0 %v216
  %258 = vmatprep.subr.bf16.mxu0 0
  %259 = vmatpush1.bf16.msra.mxu0 %v215
  %260 = vmatprep.subr.bf16.mxu0 0
  %261 = vmatpush1.bf16.msra.mxu0 %v214
  %262 = vmatprep.subr.bf16.mxu0 0
  %263 = vmatpush1.bf16.msra.mxu0 %v213
  %264 = vmatprep.subr.bf16.mxu0 0
  %265 = vmatpush1.bf16.msra.mxu0 %v212
  %266 = vmatprep.subr.bf16.mxu0 0
  %267 = vmatpush1.bf16.msra.mxu0 %v211
  %268 = vmatprep.subr.bf16.mxu0 0
  %269 = vmatpush1.bf16.msra.mxu0 %v210
  %270 = vmatprep.subr.bf16.mxu0 0
  %271 = vmatpush1.bf16.msra.mxu0 %v209
  %272 = vmatprep.subr.bf16.mxu0 0
  %273 = vmatpush2.bf16.msra.mxu0 %v224
  %274 = vmatprep.subr.bf16.mxu0 0
  %275 = vmatpush2.bf16.msra.mxu0 %v223
  %276 = vmatprep.subr.bf16.mxu0 0
  %277 = vmatpush2.bf16.msra.mxu0 %v222
  %278 = vmatprep.subr.bf16.mxu0 0
  %279 = vmatpush2.bf16.msra.mxu0 %v221
  %280 = vmatprep.subr.bf16.mxu0 0
  %281 = vmatpush2.bf16.msra.mxu0 %v220
  %282 = vmatprep.subr.bf16.mxu0 0
  %283 = vmatpush2.bf16.msra.mxu0 %v219
  %284 = vmatprep.subr.bf16.mxu0 0
  %285 = vmatpush2.bf16.msra.mxu0 %v218
  %286 = vmatprep.subr.bf16.mxu0 0
  %287 = vmatpush2.bf16.msra.mxu0 %v217
  %288 = vmatprep.mubr.bf16.mxu0 %v120
  %289 = vmatmul.mubr.bf16.gmra.mxu0 %v119
  %v290 = vpop.f32.mrf.mxu0
  %v291 = vadd.f32 %v97, %v290
  %v292 = vpop.f32.mrf.mxu0
  %v293 = vpop.f32.mrf.mxu0
  %v294 = vadd.f32 %v97, %v293
  %v295 = vpop.f32.mrf.mxu0
  %296 = vmatprep.mubr.bf16.mxu0 %v123
  %297 = vmatmul.mubr.bf16.gmra.mxu0 %v122
  %v298 = vpop.f32.mrf.mxu0
  %v299 = vadd.f32 %v97, %v298
  %v300 = vpop.f32.mrf.mxu0
  %v301 = vpop.f32.mrf.mxu0
  %v302 = vadd.f32 %v97, %v301
  %v303 = vpop.f32.mrf.mxu0
  %304 = vdwg.mxu0
  %305 = vmatprep.subr.bf16.mxu0 0
  %306 = vmatpush1.bf16.msra.mxu0 0
  %307 = vmatprep.subr.bf16.mxu0 0
  %308 = vmatpush1.bf16.msra.mxu0 0
  %309 = vmatprep.subr.bf16.mxu0 0
  %310 = vmatpush1.bf16.msra.mxu0 0
  %311 = vmatprep.subr.bf16.mxu0 0
  %312 = vmatpush1.bf16.msra.mxu0 0
  %313 = vmatprep.subr.bf16.mxu0 0
  %314 = vmatpush1.bf16.msra.mxu0 %v228
  %315 = vmatprep.subr.bf16.mxu0 0
  %316 = vmatpush1.bf16.msra.mxu0 %v227
  %317 = vmatprep.subr.bf16.mxu0 0
  %318 = vmatpush1.bf16.msra.mxu0 %v226
  %319 = vmatprep.subr.bf16.mxu0 0
  %320 = vmatpush1.bf16.msra.mxu0 %v225
  %321 = vmatprep.subr.bf16.mxu0 0
  %322 = vmatpush2.bf16.msra.mxu0 0
  %323 = vmatprep.subr.bf16.mxu0 0
  %324 = vmatpush2.bf16.msra.mxu0 0
  %325 = vmatprep.subr.bf16.mxu0 0
  %326 = vmatpush2.bf16.msra.mxu0 0
  %327 = vmatprep.subr.bf16.mxu0 0
  %328 = vmatpush2.bf16.msra.mxu0 0
  %329 = vmatprep.subr.bf16.mxu0 0
  %330 = vmatpush2.bf16.msra.mxu0 0
  %331 = vmatprep.subr.bf16.mxu0 0
  %332 = vmatpush2.bf16.msra.mxu0 0
  %333 = vmatprep.subr.bf16.mxu0 0
  %334 = vmatpush2.bf16.msra.mxu0 0
  %335 = vmatprep.subr.bf16.mxu0 0
  %336 = vmatpush2.bf16.msra.mxu0 0
  %337 = vmatprep.mubr.bf16.mxu0 0
  %338 = vmatmul.mubr.bf16.gmra.mxu0 %v251
  %v339 = vpop.f32.mrf.mxu0
  %v340 = vadd.f32 %v291, %v339
  %v341 = vpop.f32.mrf.mxu0
  %v342 = vpop.f32.mrf.mxu0
  %v343 = vadd.f32 %v294, %v342
  %v344 = vpop.f32.mrf.mxu0
  %345 = vmatprep.mubr.bf16.mxu0 0
  %346 = vmatmul.mubr.bf16.gmra.mxu0 %v254
  %v347 = vpop.f32.mrf.mxu0
  %v348 = vadd.f32 %v299, %v347
  %v349 = vpop.f32.mrf.mxu0
  %v350 = vpop.f32.mrf.mxu0
  %v351 = vadd.f32 %v302, %v350
  %v352 = vpop.f32.mrf.mxu0
  %353 = vdwg.mxu0
  %v354 = vtanh.pop %v340
  %v355 = vtanh.pop %v343
  %v356 = vtanh.pop %v348
  %v357 = vtanh.pop %v351
  %v358 = vpack.c.bf16 %v355, %v354
  %v359 = vpack.c.bf16 %v357, %v356
  %v360 = vld [vmem:[%s4] sm:$0xf]
  %v361 = vld [vmem:[%s4 + $0x4] sm:$0xf]
  %v362 = vld [vmem:[%s4 + $0x8] sm:$0xf]
  %v363 = vld [vmem:[%s4 + $0xc] sm:$0xf]
  %v364 = vld [vmem:[%s5] sm:$0x1]
  %v366 = vlaneseq
  %v367 = vshrl.u32 %v366, 7
  %v368 = vsub.s32 0, %v367
  %v369 = vrot.slane %v364, %v368
  %v375 = vunpack.c.l.b16 %v360
  %v376 = vunpack.c.l.b16 %v361
  %v377 = vunpack.c.l.b16 %v362
  %v378 = vunpack.c.l.b16 %v363
  %v379 = vpack.c.b16 %v376, %v375
  %v380 = vpack.c.b16 %v378, %v377
  %vm383 = vcmask 261120
  %v385 = vsel %vm383, %v358, 0
  %v388 = vsel %vm383, %v359, 0
  %390 = vmatprep.subr.bf16.mxu0 0
  %391 = vmatpush1.bf16.msra.mxu0 0
  %392 = vmatprep.subr.bf16.mxu0 0
  %393 = vmatpush1.bf16.msra.mxu0 0
  %394 = vmatprep.subr.bf16.mxu0 0
  %395 = vmatpush1.bf16.msra.mxu0 0
  %396 = vmatprep.subr.bf16.mxu0 0
  %397 = vmatpush1.bf16.msra.mxu0 0
  %398 = vmatprep.subr.bf16.mxu0 0
  %399 = vmatpush1.bf16.msra.mxu0 0
  %400 = vmatprep.subr.bf16.mxu0 0
  %401 = vmatpush1.bf16.msra.mxu0 0
  %402 = vmatprep.subr.bf16.mxu0 0
  %403 = vmatpush1.bf16.msra.mxu0 %v380
  %404 = vmatprep.subr.bf16.mxu0 0
  %405 = vmatpush1.bf16.msra.mxu0 %v379
  %406 = vmatprep.subr.bf16.mxu0 0
  %407 = vmatpush2.bf16.msra.mxu0 0
  %408 = vmatprep.subr.bf16.mxu0 0
  %409 = vmatpush2.bf16.msra.mxu0 0
  %410 = vmatprep.subr.bf16.mxu0 0
  %411 = vmatpush2.bf16.msra.mxu0 0
  %412 = vmatprep.subr.bf16.mxu0 0
  %413 = vmatpush2.bf16.msra.mxu0 0
  %414 = vmatprep.subr.bf16.mxu0 0
  %415 = vmatpush2.bf16.msra.mxu0 0
  %416 = vmatprep.subr.bf16.mxu0 0
  %417 = vmatpush2.bf16.msra.mxu0 0
  %418 = vmatprep.subr.bf16.mxu0 0
  %419 = vmatpush2.bf16.msra.mxu0 0
  %420 = vmatprep.subr.bf16.mxu0 0
  %421 = vmatpush2.bf16.msra.mxu0 0
  %422 = vmatprep.mubr.bf16.mxu0 0
  %423 = vmatmul.mubr.bf16.gmra.mxu0 %v385
  %v424 = vpop.f32.mrf.mxu0
  %v425 = vadd.f32 %v369, %v424
  %v426 = vpop.f32.mrf.mxu0
  %v427 = vpop.f32.mrf.mxu0
  %v428 = vadd.f32 %v369, %v427
  %v429 = vpop.f32.mrf.mxu0
  %430 = vmatprep.mubr.bf16.mxu0 0
  %431 = vmatmul.mubr.bf16.gmra.mxu0 %v388
  %v432 = vpop.f32.mrf.mxu0
  %v433 = vadd.f32 %v369, %v432
  %v434 = vpop.f32.mrf.mxu0
  %v435 = vpop.f32.mrf.mxu0
  %v436 = vadd.f32 %v369, %v435
  %v437 = vpop.f32.mrf.mxu0
  %438 = vdwg.mxu0
  %v439 = vtanh.pop %v425
  %v440 = vtanh.pop %v428
  %v441 = vtanh.pop %v433
  %v442 = vtanh.pop %v436
  %v443 = vpack.c.bf16 %v440, %v439
  %v444 = vpack.c.bf16 %v442, %v441
  %s445 = scalar_lea.vmem %s4, 16
  %v446 = vld [vmem:[%s445] sm:$0xf]
  %v447 = vld [vmem:[%s445 + $0x4] sm:$0xf]
  %v448 = vld [vmem:[%s445 + $0x8] sm:$0xf]
  %v449 = vld [vmem:[%s445 + $0xc] sm:$0xf]
  %s450 = scalar_lea.vmem %s5, 1
  %v451 = vld [vmem:[%s450] sm:$0x1]
  %v453 = vlaneseq
  %v454 = vshrl.u32 %v453, 7
  %v455 = vsub.s32 0, %v454
  %v456 = vrot.slane %v451, %v455
  %v462 = vunpack.c.l.b16 %v446
  %v463 = vunpack.c.l.b16 %v447
  %v464 = vunpack.c.l.b16 %v448
  %v465 = vunpack.c.l.b16 %v449
  %v466 = vpack.c.b16 %v463, %v462
  %v467 = vpack.c.b16 %v465, %v464
  %v471 = vsel %vm383, %v443, 0
  %v474 = vsel %vm383, %v444, 0
  %476 = vmatprep.subr.bf16.mxu0 0
  %477 = vmatpush1.bf16.msra.mxu0 0
  %478 = vmatprep.subr.bf16.mxu0 0
  %479 = vmatpush1.bf16.msra.mxu0 0
  %480 = vmatprep.subr.bf16.mxu0 0
  %481 = vmatpush1.bf16.msra.mxu0 0
  %482 = vmatprep.subr.bf16.mxu0 0
  %483 = vmatpush1.bf16.msra.mxu0 0
  %484 = vmatprep.subr.bf16.mxu0 0
  %485 = vmatpush1.bf16.msra.mxu0 0
  %486 = vmatprep.subr.bf16.mxu0 0
  %487 = vmatpush1.bf16.msra.mxu0 0
  %488 = vmatprep.subr.bf16.mxu0 0
  %489 = vmatpush1.bf16.msra.mxu0 %v467
  %490 = vmatprep.subr.bf16.mxu0 0
  %491 = vmatpush1.bf16.msra.mxu0 %v466
  %492 = vmatprep.subr.bf16.mxu0 0
  %493 = vmatpush2.bf16.msra.mxu0 0
  %494 = vmatprep.subr.bf16.mxu0 0
  %495 = vmatpush2.bf16.msra.mxu0 0
  %496 = vmatprep.subr.bf16.mxu0 0
  %497 = vmatpush2.bf16.msra.mxu0 0
  %498 = vmatprep.subr.bf16.mxu0 0
  %499 = vmatpush2.bf16.msra.mxu0 0
  %500 = vmatprep.subr.bf16.mxu0 0
  %501 = vmatpush2.bf16.msra.mxu0 0
  %502 = vmatprep.subr.bf16.mxu0 0
  %503 = vmatpush2.bf16.msra.mxu0 0
  %504 = vmatprep.subr.bf16.mxu0 0
  %505 = vmatpush2.bf16.msra.mxu0 0
  %506 = vmatprep.subr.bf16.mxu0 0
  %507 = vmatpush2.bf16.msra.mxu0 0
  %508 = vmatprep.mubr.bf16.mxu0 0
  %509 = vmatmul.mubr.bf16.gmra.mxu0 %v471
  %v510 = vpop.f32.mrf.mxu0
  %v511 = vadd.f32 %v456, %v510
  %v512 = vpop.f32.mrf.mxu0
  %v513 = vpop.f32.mrf.mxu0
  %v514 = vadd.f32 %v456, %v513
  %v515 = vpop.f32.mrf.mxu0
  %516 = vmatprep.mubr.bf16.mxu0 0
  %517 = vmatmul.mubr.bf16.gmra.mxu0 %v474
  %v518 = vpop.f32.mrf.mxu0
  %v519 = vadd.f32 %v456, %v518
  %v520 = vpop.f32.mrf.mxu0
  %v521 = vpop.f32.mrf.mxu0
  %v522 = vadd.f32 %v456, %v521
  %v523 = vpop.f32.mrf.mxu0
  %524 = vdwg.mxu0
  %v525 = vtanh.pop %v511
  %v526 = vtanh.pop %v514
  %v527 = vtanh.pop %v519
  %v528 = vtanh.pop %v522
  %v529 = vpack.c.bf16 %v526, %v525
  %v530 = vpack.c.bf16 %v528, %v527
  %s531 = scalar_lea.vmem %s4, 32
  %v532 = vld [vmem:[%s531] sm:$0xf]
  %v533 = vld [vmem:[%s531 + $0x4] sm:$0xf]
  %v534 = vld [vmem:[%s531 + $0x8] sm:$0xf]
  %v535 = vld [vmem:[%s531 + $0xc] sm:$0xf]
  %s536 = scalar_lea.vmem %s5, 2
  %v537 = vld [vmem:[%s536] sm:$0x1]
  %v539 = vlaneseq
  %v540 = vshrl.u32 %v539, 7
  %v541 = vsub.s32 0, %v540
  %v542 = vrot.slane %v537, %v541
  %v548 = vunpack.c.l.b16 %v532
  %v549 = vunpack.c.l.b16 %v533
  %v550 = vunpack.c.l.b16 %v534
  %v551 = vunpack.c.l.b16 %v535
  %v552 = vpack.c.b16 %v549, %v548
  %v553 = vpack.c.b16 %v551, %v550
  %v557 = vsel %vm383, %v529, 0
  %v560 = vsel %vm383, %v530, 0
  %562 = vmatprep.subr.bf16.mxu0 0
  %563 = vmatpush1.bf16.msra.mxu0 0
  %564 = vmatprep.subr.bf16.mxu0 0
  %565 = vmatpush1.bf16.msra.mxu0 0
  %566 = vmatprep.subr.bf16.mxu0 0
  %567 = vmatpush1.bf16.msra.mxu0 0
  %568 = vmatprep.subr.bf16.mxu0 0
  %569 = vmatpush1.bf16.msra.mxu0 0
  %570 = vmatprep.subr.bf16.mxu0 0
  %571 = vmatpush1.bf16.msra.mxu0 0
  %572 = vmatprep.subr.bf16.mxu0 0
  %573 = vmatpush1.bf16.msra.mxu0 0
  %574 = vmatprep.subr.bf16.mxu0 0
  %575 = vmatpush1.bf16.msra.mxu0 %v553
  %576 = vmatprep.subr.bf16.mxu0 0
  %577 = vmatpush1.bf16.msra.mxu0 %v552
  %578 = vmatprep.subr.bf16.mxu0 0
  %579 = vmatpush2.bf16.msra.mxu0 0
  %580 = vmatprep.subr.bf16.mxu0 0
  %581 = vmatpush2.bf16.msra.mxu0 0
  %582 = vmatprep.subr.bf16.mxu0 0
  %583 = vmatpush2.bf16.msra.mxu0 0
  %584 = vmatprep.subr.bf16.mxu0 0
  %585 = vmatpush2.bf16.msra.mxu0 0
  %586 = vmatprep.subr.bf16.mxu0 0
  %587 = vmatpush2.bf16.msra.mxu0 0
  %588 = vmatprep.subr.bf16.mxu0 0
  %589 = vmatpush2.bf16.msra.mxu0 0
  %590 = vmatprep.subr.bf16.mxu0 0
  %591 = vmatpush2.bf16.msra.mxu0 0
  %592 = vmatprep.subr.bf16.mxu0 0
  %593 = vmatpush2.bf16.msra.mxu0 0
  %594 = vmatprep.mubr.bf16.mxu0 0
  %595 = vmatmul.mubr.bf16.gmra.mxu0 %v557
  %v596 = vpop.f32.mrf.mxu0
  %v597 = vadd.f32 %v542, %v596
  %v598 = vpop.f32.mrf.mxu0
  %v599 = vpop.f32.mrf.mxu0
  %v600 = vadd.f32 %v542, %v599
  %v601 = vpop.f32.mrf.mxu0
  %602 = vmatprep.mubr.bf16.mxu0 0
  %603 = vmatmul.mubr.bf16.gmra.mxu0 %v560
  %v604 = vpop.f32.mrf.mxu0
  %v605 = vadd.f32 %v542, %v604
  %v606 = vpop.f32.mrf.mxu0
  %v607 = vpop.f32.mrf.mxu0
  %v608 = vadd.f32 %v542, %v607
  %v609 = vpop.f32.mrf.mxu0
  %610 = vdwg.mxu0
  %v611 = vtanh.pop %v597
  %v612 = vtanh.pop %v600
  %v613 = vtanh.pop %v605
  %v614 = vtanh.pop %v608
  %v615 = vsub.f32 %v354, %v356
  %v616 = vsub.f32 %v355, %v357
  %v617 = vand.u32 2147483647, %v615
  %v618 = vand.u32 2147483647, %v616
  %v619 = vsel %vm383, %v617, 0.0
  %v620 = vsel %vm383, %v618, 0.0
  %v621 = vadd.f32 %v619, %v620
  %622 = vadd.xlane.f32.xlu0 %v621
  %v623 = vpop.xlane.xlu0 %622
  %v624 = vrot.slane %v623, 4
  %v625 = vadd.f32 %v623, %v624
  %v626 = vrot.slane %v625, 2
  %v627 = vadd.f32 %v625, %v626
  %v628 = vrot.slane %v627, 1
  %v629 = vadd.f32 %v627, %v628
  %s630 = vtos %v629
  %v631 = vrcp.pop 512.0
  %s632 = vtos %v631
  %s633 = smul.f32 %s630, %s632
  %s634 = sadd.f32 %s633, 0.0
  %v635 = vsub.f32 %v439, %v441
  %v636 = vsub.f32 %v440, %v442
  %v637 = vand.u32 2147483647, %v635
  %v638 = vand.u32 2147483647, %v636
  %v639 = vsel %vm383, %v637, 0.0
  %v640 = vsel %vm383, %v638, 0.0
  %v641 = vadd.f32 %v639, %v640
  %642 = vadd.xlane.f32.xlu0 %v641
  %v643 = vpop.xlane.xlu0 %642
  %v644 = vrot.slane %v643, 4
  %v645 = vadd.f32 %v643, %v644
  %v646 = vrot.slane %v645, 2
  %v647 = vadd.f32 %v645, %v646
  %v648 = vrot.slane %v647, 1
  %v649 = vadd.f32 %v647, %v648
  %s650 = vtos %v649
  %v651 = vrcp.pop 512.0
  %s652 = vtos %v651
  %s653 = smul.f32 %s650, %s652
  %s654 = sadd.f32 %s634, %s653
  %v655 = vsub.f32 %v525, %v527
  %v656 = vsub.f32 %v526, %v528
  %v657 = vand.u32 2147483647, %v655
  %v658 = vand.u32 2147483647, %v656
  %v659 = vsel %vm383, %v657, 0.0
  %v660 = vsel %vm383, %v658, 0.0
  %v661 = vadd.f32 %v659, %v660
  %662 = vadd.xlane.f32.xlu0 %v661
  %v663 = vpop.xlane.xlu0 %662
  %v664 = vrot.slane %v663, 4
  %v665 = vadd.f32 %v663, %v664
  %v666 = vrot.slane %v665, 2
  %v667 = vadd.f32 %v665, %v666
  %v668 = vrot.slane %v667, 1
  %v669 = vadd.f32 %v667, %v668
  %s670 = vtos %v669
  %v671 = vrcp.pop 512.0
  %s672 = vtos %v671
  %s673 = smul.f32 %s670, %s672
  %s674 = sadd.f32 %s654, %s673
  %v675 = vsub.f32 %v611, %v613
  %v676 = vsub.f32 %v612, %v614
  %v677 = vand.u32 2147483647, %v675
  %v678 = vand.u32 2147483647, %v676
  %v679 = vsel %vm383, %v677, 0.0
  %v680 = vsel %vm383, %v678, 0.0
  %v681 = vadd.f32 %v679, %v680
  %682 = vadd.xlane.f32.xlu0 %v681
  %v683 = vpop.xlane.xlu0 %682
  %v684 = vrot.slane %v683, 4
  %v685 = vadd.f32 %v683, %v684
  %v686 = vrot.slane %v685, 2
  %v687 = vadd.f32 %v685, %v686
  %v688 = vrot.slane %v687, 1
  %v689 = vadd.f32 %v687, %v688
  %s690 = vtos %v689
  %v691 = vrcp.pop 512.0
  %s692 = vtos %v691
  %s693 = smul.f32 %s690, %s692
  %s694 = sadd.f32 %s674, %s693
  %699 = vrot.lane.b32.xlu0 %v439, 32
  %v700 = vpop.permute.xlu0 %699
  %701 = vrot.lane.b32.xlu0 %v440, 32
  %v702 = vpop.permute.xlu0 %701
  %703 = vrot.lane.b32.xlu0 %v441, 32
  %v704 = vpop.permute.xlu0 %703
  %705 = vrot.lane.b32.xlu0 %v442, 32
  %v706 = vpop.permute.xlu0 %705
  %715 = vrot.lane.b32.xlu0 %v525, 64
  %v716 = vpop.permute.xlu0 %715
  %717 = vrot.lane.b32.xlu0 %v526, 64
  %v718 = vpop.permute.xlu0 %717
  %719 = vrot.lane.b32.xlu0 %v527, 64
  %v720 = vpop.permute.xlu0 %719
  %721 = vrot.lane.b32.xlu0 %v528, 64
  %v722 = vpop.permute.xlu0 %721
  %731 = vrot.lane.b32.xlu0 %v611, 96
  %v732 = vpop.permute.xlu0 %731
  %733 = vrot.lane.b32.xlu0 %v612, 96
  %v734 = vpop.permute.xlu0 %733
  %735 = vrot.lane.b32.xlu0 %v613, 96
  %v736 = vpop.permute.xlu0 %735
  %737 = vrot.lane.b32.xlu0 %v614, 96
  %v738 = vpop.permute.xlu0 %737
  %v743 = vsel %vm383, %v354, %v700
  %v744 = vsel %vm383, %v355, %v702
  %v745 = vsel %vm383, %v356, %v704
  %v746 = vsel %vm383, %v357, %v706
  %v747 = vsel %vm249, %v743, %v716
  %v748 = vsel %vm249, %v744, %v718
  %v749 = vsel %vm249, %v745, %v720
  %v750 = vsel %vm249, %v746, %v722
  %vm751 = vcmask 785408
  %v752 = vsel %vm751, %v747, %v732
  %v753 = vsel %vm751, %v748, %v734
  %v754 = vsel %vm751, %v749, %v736
  %v755 = vsel %vm751, %v750, %v738
  %v756 = vpack.c.bf16 %v753, %v752
  %v757 = vpack.c.bf16 %v755, %v754
  %v758 = vld [vmem:[%s6] sm:$0xf]
  %v759 = vld [vmem:[%s6 + $0x4] sm:$0xf]
  %v760 = vld [vmem:[%s6 + $0x8] sm:$0xf]
  %v761 = vld [vmem:[%s6 + $0xc] sm:$0xf]
  %v762 = vld [vmem:[%s6 + $0x10] sm:$0xf]
  %v763 = vld [vmem:[%s6 + $0x14] sm:$0xf]
  %v764 = vld [vmem:[%s6 + $0x18] sm:$0xf]
  %v765 = vld [vmem:[%s6 + $0x1c] sm:$0xf]
  %v766 = vld [vmem:[%s6 + $0x20] sm:$0xf]
  %v767 = vld [vmem:[%s6 + $0x24] sm:$0xf]
  %v768 = vld [vmem:[%s6 + $0x28] sm:$0xf]
  %v769 = vld [vmem:[%s6 + $0x2c] sm:$0xf]
  %v770 = vld [vmem:[%s6 + $0x30] sm:$0xf]
  %v771 = vld [vmem:[%s6 + $0x34] sm:$0xf]
  %v772 = vld [vmem:[%s6 + $0x38] sm:$0xf]
  %v773 = vld [vmem:[%s6 + $0x3c] sm:$0xf]
  %v774 = vld [vmem:[%s7] sm:$0x1]
  %v776 = vlaneseq
  %v777 = vshrl.u32 %v776, 7
  %v778 = vsub.s32 0, %v777
  %v779 = vrot.slane %v774, %v778
  %v797 = vunpack.c.l.b16 %v758
  %v798 = vunpack.c.l.b16 %v759
  %v799 = vunpack.c.l.b16 %v760
  %v800 = vunpack.c.l.b16 %v761
  %v801 = vunpack.c.l.b16 %v762
  %v802 = vunpack.c.l.b16 %v763
  %v803 = vunpack.c.l.b16 %v764
  %v804 = vunpack.c.l.b16 %v765
  %v805 = vunpack.c.l.b16 %v766
  %v806 = vunpack.c.l.b16 %v767
  %v807 = vunpack.c.l.b16 %v768
  %v808 = vunpack.c.l.b16 %v769
  %v809 = vunpack.c.l.b16 %v770
  %v810 = vunpack.c.l.b16 %v771
  %v811 = vunpack.c.l.b16 %v772
  %v812 = vunpack.c.l.b16 %v773
  %v813 = vpack.c.b16 %v798, %v797
  %v814 = vpack.c.b16 %v800, %v799
  %v815 = vpack.c.b16 %v802, %v801
  %v816 = vpack.c.b16 %v804, %v803
  %v817 = vpack.c.b16 %v806, %v805
  %v818 = vpack.c.b16 %v808, %v807
  %v819 = vpack.c.b16 %v810, %v809
  %v820 = vpack.c.b16 %v812, %v811
  %829 = vmatprep.subr.bf16.mxu0 0
  %830 = vmatpush1.bf16.msra.mxu0 %v820
  %831 = vmatprep.subr.bf16.mxu0 0
  %832 = vmatpush1.bf16.msra.mxu0 %v819
  %833 = vmatprep.subr.bf16.mxu0 0
  %834 = vmatpush1.bf16.msra.mxu0 %v818
  %835 = vmatprep.subr.bf16.mxu0 0
  %836 = vmatpush1.bf16.msra.mxu0 %v817
  %837 = vmatprep.subr.bf16.mxu0 0
  %838 = vmatpush1.bf16.msra.mxu0 %v816
  %839 = vmatprep.subr.bf16.mxu0 0
  %840 = vmatpush1.bf16.msra.mxu0 %v815
  %841 = vmatprep.subr.bf16.mxu0 0
  %842 = vmatpush1.bf16.msra.mxu0 %v814
  %843 = vmatprep.subr.bf16.mxu0 0
  %844 = vmatpush1.bf16.msra.mxu0 %v813
  %845 = vmatprep.subr.bf16.mxu0 0
  %846 = vmatpush2.bf16.msra.mxu0 0
  %847 = vmatprep.subr.bf16.mxu0 0
  %848 = vmatpush2.bf16.msra.mxu0 0
  %849 = vmatprep.subr.bf16.mxu0 0
  %850 = vmatpush2.bf16.msra.mxu0 0
  %851 = vmatprep.subr.bf16.mxu0 0
  %852 = vmatpush2.bf16.msra.mxu0 0
  %853 = vmatprep.subr.bf16.mxu0 0
  %854 = vmatpush2.bf16.msra.mxu0 0
  %855 = vmatprep.subr.bf16.mxu0 0
  %856 = vmatpush2.bf16.msra.mxu0 0
  %857 = vmatprep.subr.bf16.mxu0 0
  %858 = vmatpush2.bf16.msra.mxu0 0
  %859 = vmatprep.subr.bf16.mxu0 0
  %860 = vmatpush2.bf16.msra.mxu0 0
  %861 = vmatprep.mubr.bf16.mxu0 0
  %862 = vmatmul.mubr.bf16.gmra.mxu0 %v756
  %v863 = vpop.f32.mrf.mxu0
  %v864 = vadd.f32 %v779, %v863
  %v865 = vpop.f32.mrf.mxu0
  %v866 = vpop.f32.mrf.mxu0
  %v867 = vadd.f32 %v779, %v866
  %v868 = vpop.f32.mrf.mxu0
  %869 = vmatprep.mubr.bf16.mxu0 0
  %870 = vmatmul.mubr.bf16.gmra.mxu0 %v757
  %v871 = vpop.f32.mrf.mxu0
  %v872 = vadd.f32 %v779, %v871
  %v873 = vpop.f32.mrf.mxu0
  %v874 = vpop.f32.mrf.mxu0
  %v875 = vadd.f32 %v779, %v874
  %v876 = vpop.f32.mrf.mxu0
  %877 = vdwg.mxu0
  %v878 = vtanh.pop %v864
  %v879 = vtanh.pop %v867
  %v880 = vtanh.pop %v872
  %v881 = vtanh.pop %v875
  %v882 = vld [vmem:[%s1] sm:$0xff]
  %v883 = vld [vmem:[%s1 + $0x8] sm:$0xff]
  %v884 = vld [vmem:[%s1 + $0x10] sm:$0xff]
  %v885 = vld [vmem:[%s1 + $0x18] sm:$0xff]
  %v886 = vadd.f32 %v878, %v882
  %v887 = vadd.f32 %v879, %v883
  %v888 = vadd.f32 %v880, %v884
  %v889 = vadd.f32 %v881, %v885
  %v890 = vpack.c.bf16 %v887, %v886
  %v891 = vpack.c.bf16 %v889, %v888
  %v892 = vld [vmem:[%s8] sm:$0xf]
  %v893 = vld [vmem:[%s8 + $0x4] sm:$0xf]
  %v894 = vld [vmem:[%s8 + $0x8] sm:$0xf]
  %v895 = vld [vmem:[%s8 + $0xc] sm:$0xf]
  %v896 = vld [vmem:[%s9] sm:$0x1]
  %v898 = vlaneseq
  %v899 = vshrl.u32 %v898, 7
  %v900 = vsub.s32 0, %v899
  %v901 = vrot.slane %v896, %v900
  %v907 = vunpack.c.l.b16 %v892
  %v908 = vunpack.c.l.b16 %v893
  %v909 = vunpack.c.l.b16 %v894
  %v910 = vunpack.c.l.b16 %v895
  %v911 = vpack.c.b16 %v908, %v907
  %v912 = vpack.c.b16 %v910, %v909
  %v916 = vsel %vm383, %v890, 0
  %v919 = vsel %vm383, %v891, 0
  %921 = vmatprep.subr.bf16.mxu0 0
  %922 = vmatpush1.bf16.msra.mxu0 0
  %923 = vmatprep.subr.bf16.mxu0 0
  %924 = vmatpush1.bf16.msra.mxu0 0
  %925 = vmatprep.subr.bf16.mxu0 0
  %926 = vmatpush1.bf16.msra.mxu0 0
  %927 = vmatprep.subr.bf16.mxu0 0
  %928 = vmatpush1.bf16.msra.mxu0 0
  %929 = vmatprep.subr.bf16.mxu0 0
  %930 = vmatpush1.bf16.msra.mxu0 0
  %931 = vmatprep.subr.bf16.mxu0 0
  %932 = vmatpush1.bf16.msra.mxu0 0
  %933 = vmatprep.subr.bf16.mxu0 0
  %934 = vmatpush1.bf16.msra.mxu0 %v912
  %935 = vmatprep.subr.bf16.mxu0 0
  %936 = vmatpush1.bf16.msra.mxu0 %v911
  %937 = vmatprep.subr.bf16.mxu0 0
  %938 = vmatpush2.bf16.msra.mxu0 0
  %939 = vmatprep.subr.bf16.mxu0 0
  %940 = vmatpush2.bf16.msra.mxu0 0
  %941 = vmatprep.subr.bf16.mxu0 0
  %942 = vmatpush2.bf16.msra.mxu0 0
  %943 = vmatprep.subr.bf16.mxu0 0
  %944 = vmatpush2.bf16.msra.mxu0 0
  %945 = vmatprep.subr.bf16.mxu0 0
  %946 = vmatpush2.bf16.msra.mxu0 0
  %947 = vmatprep.subr.bf16.mxu0 0
  %948 = vmatpush2.bf16.msra.mxu0 0
  %949 = vmatprep.subr.bf16.mxu0 0
  %950 = vmatpush2.bf16.msra.mxu0 0
  %951 = vmatprep.subr.bf16.mxu0 0
  %952 = vmatpush2.bf16.msra.mxu0 0
  %953 = vmatprep.mubr.bf16.mxu0 0
  %954 = vmatmul.mubr.bf16.gmra.mxu0 %v916
  %v955 = vpop.f32.mrf.mxu0
  %v956 = vadd.f32 %v901, %v955
  %v957 = vpop.f32.mrf.mxu0
  %v958 = vpop.f32.mrf.mxu0
  %v959 = vadd.f32 %v901, %v958
  %v960 = vpop.f32.mrf.mxu0
  %961 = vmatprep.mubr.bf16.mxu0 0
  %962 = vmatmul.mubr.bf16.gmra.mxu0 %v919
  %v963 = vpop.f32.mrf.mxu0
  %v964 = vadd.f32 %v901, %v963
  %v965 = vpop.f32.mrf.mxu0
  %v966 = vpop.f32.mrf.mxu0
  %v967 = vadd.f32 %v901, %v966
  %v968 = vpop.f32.mrf.mxu0
  %969 = vdwg.mxu0
  %v970 = vtanh.pop %v956
  %v971 = vtanh.pop %v959
  %v972 = vtanh.pop %v964
  %v973 = vtanh.pop %v967
  %v974 = vld [vmem:[%s10] sm:$0x1]
  %v976 = vlaneseq
  %v977 = vshrl.u32 %v976, 7
  %v978 = vsub.s32 0, %v977
  %v979 = vrot.slane %v974, %v978
  %v981 = vmul.f32 %v970, %v979
  %v982 = vmul.f32 %v971, %v979
  %v983 = vmul.f32 %v972, %v979
  %v984 = vmul.f32 %v973, %v979
  %v985 = vsel %vm383, %v981, 0.0
  %986 = vadd.xlane.f32.xlu0 %v985
  %v987 = vpop.xlane.xlu0 %986
  %v988 = vsel %vm383, %v982, 0.0
  %989 = vadd.xlane.f32.xlu0 %v988
  %v990 = vpop.xlane.xlu0 %989
  %v991 = vsel %vm383, %v983, 0.0
  %992 = vadd.xlane.f32.xlu0 %v991
  %v993 = vpop.xlane.xlu0 %992
  %v994 = vsel %vm383, %v984, 0.0
  %995 = vadd.xlane.f32.xlu0 %v994
  %v996 = vpop.xlane.xlu0 %995
  %v997 = vld [vmem:[#allocation2] sm:$0x1]
  %v999 = vlaneseq
  %v1000 = vshrl.u32 %v999, 7
  %v1001 = vsub.s32 0, %v1000
  %v1002 = vrot.slane %v997, %v1001
  %v1004 = vadd.f32 %v987, %v1002
  %v1005 = vadd.f32 %v990, %v1002
  %v1006 = vadd.f32 %v993, %v1002
  %v1007 = vadd.f32 %v996, %v1002
  %v1008 = vsub.f32 %v970, %v972
  %v1009 = vsub.f32 %v971, %v973
  %v1010 = vand.u32 2147483647, %v1008
  %v1011 = vand.u32 2147483647, %v1009
  %v1012 = vsel %vm383, %v1010, 0.0
  %v1013 = vsel %vm383, %v1011, 0.0
  %v1014 = vadd.f32 %v1012, %v1013
  %1015 = vadd.xlane.f32.xlu0 %v1014
  %v1016 = vpop.xlane.xlu0 %1015
  %v1017 = vrot.slane %v1016, 4
  %v1018 = vadd.f32 %v1016, %v1017
  %v1019 = vrot.slane %v1018, 2
  %v1020 = vadd.f32 %v1018, %v1019
  %v1021 = vrot.slane %v1020, 1
  %v1022 = vadd.f32 %v1020, %v1021
  %s1023 = vtos %v1022
  %v1024 = vrcp.pop 512.0
  %s1025 = vtos %v1024
  %s1026 = smul.f32 %s1023, %s1025
  %v1027 = vsub.f32 1.0, %v1006
  %v1028 = vsub.f32 1.0, %v1007
  %v1029 = vmul.f32 %v1027, %v1027
  %v1030 = vmul.f32 %v1028, %v1028
  %vm1031 = vcmask 7168
  %v1032 = vsel %vm1031, %v1029, 0.0
  %v1033 = vsel %vm1031, %v1030, 0.0
  %v1034 = vadd.f32 %v1032, %v1033
  %1035 = vadd.xlane.f32.xlu0 %v1034
  %v1036 = vpop.xlane.xlu0 %1035
  %v1037 = vrot.slane %v1036, 4
  %v1038 = vadd.f32 %v1036, %v1037
  %v1039 = vrot.slane %v1038, 2
  %v1040 = vadd.f32 %v1038, %v1039
  %v1041 = vrot.slane %v1040, 1
  %v1042 = vadd.f32 %v1040, %v1041
  %s1043 = vtos %v1042
  %v1044 = vrcp.pop 16.0
  %s1045 = vtos %v1044
  %s1046 = smul.f32 %s1043, %s1045
  %s1047 = sadd.f32 %s1046, %s1026
  %v1048 = vsub.f32 1.0, %v1004
  %v1049 = vsub.f32 1.0, %v1005
  %v1050 = vmul.f32 %v1048, %v1048
  %v1051 = vmul.f32 %v1049, %v1049
  %v1052 = vsel %vm1031, %v1050, 0.0
  %v1053 = vsel %vm1031, %v1051, 0.0
  %v1054 = vadd.f32 %v1052, %v1053
  %1055 = vadd.xlane.f32.xlu0 %v1054
  %v1056 = vpop.xlane.xlu0 %1055
  %v1057 = vrot.slane %v1056, 4
  %v1058 = vadd.f32 %v1056, %v1057
  %v1059 = vrot.slane %v1058, 2
  %v1060 = vadd.f32 %v1058, %v1059
  %v1061 = vrot.slane %v1060, 1
  %v1062 = vadd.f32 %v1060, %v1061
  %s1063 = vtos %v1062
  %v1064 = vrcp.pop 16.0
  %s1065 = vtos %v1064
  %s1066 = smul.f32 %s1063, %s1065
  %v1067 = vmul.f32 %v1006, %v1006
  %v1068 = vmul.f32 %v1007, %v1007
  %v1069 = vsel %vm1031, %v1067, 0.0
  %v1070 = vsel %vm1031, %v1068, 0.0
  %v1071 = vadd.f32 %v1069, %v1070
  %1072 = vadd.xlane.f32.xlu0 %v1071
  %v1073 = vpop.xlane.xlu0 %1072
  %v1074 = vrot.slane %v1073, 4
  %v1075 = vadd.f32 %v1073, %v1074
  %v1076 = vrot.slane %v1075, 2
  %v1077 = vadd.f32 %v1075, %v1076
  %v1078 = vrot.slane %v1077, 1
  %v1079 = vadd.f32 %v1077, %v1078
  %s1080 = vtos %v1079
  %v1081 = vrcp.pop 16.0
  %s1082 = vtos %v1081
  %s1083 = smul.f32 %s1080, %s1082
  %s1084 = sadd.f32 %s1066, %s1083
  %v1085 = vlaneseq
  %v1086 = vand.u32 %v1085, 127
  %vm1087 = vcmp.eq.s32.totalorder %v1086, 0
  %v1088 = vstv %s694
  %v1089 = vsel %vm1087, %v1088, 0.0
  %vm1090 = vcmp.eq.s32.totalorder %v1086, 1
  %v1091 = vstv %s1047
  %v1092 = vsel %vm1090, %v1091, 0.0
  %v1093 = vadd.f32 %v1089, %v1092
  %vm1094 = vcmp.eq.s32.totalorder %v1086, 2
  %v1095 = vstv %s1084
  %v1096 = vsel %vm1094, %v1095, 0.0
  %v1097 = vadd.f32 %v1093, %v1096
  %1098 = vst [vmem:[%s12] sm:$0x1] %v1097
  // Predicated region
  $region50: #{_fused_losses.1} parent=0 // pred_check
    _
  $region51: #{_fused_losses.1} parent=0 // pred_check_branch
    %1100 = sbr.rel (0) target = $region53
  $region52: #{_fused_losses.1} parent=0 // pred_region
    _
  $region53: #{_fused_losses.1} parent=0 // pred_fallthru
    _
  // Predicated region
  $region54: #{_fused_losses.1} parent=0 // pred_check
    _
  $region55: #{_fused_losses.1} parent=0 // pred_check_branch
    %1102 = sbr.rel (0) target = $region57
  $region56: #{_fused_losses.1} parent=0 // pred_region
    _
  $region57: #{_fused_losses.1} parent=0 // pred_fallthru
    _

</llo_original>
